<compile_context>
chip_gen: v6e
topology: v6e:2x2x1
jax: 0.10.0
libtpu: 0.0.40
codegen_flags: <defaults>
</compile_context>

<pallas_src>
import functools

import jax
import jax.numpy as jnp
from jax import lax
from jax.experimental import pallas as pl
from jax.experimental.pallas import tpu as pltpu


def _round_up(x, m):
    return ((x + m - 1) // m) * m


def _location_kernel(wf_ref, x_ref, o_ref, *, n_taps, use_mxu):
    """One (batch, time-tile) step of the fused Conv1d+Linear.

    wf_ref : (A8, CK)       fused weights: attention dim on sublanes, taps on lanes.
    x_ref  : (1, CK, tileT) im2col tile: taps on sublanes, time on lanes (dense).
    o_ref  : (1, A8, tileT) transposed output tile: time on lanes (dense).
    """
    w = wf_ref[...]          # one dense weight load
    x = x_ref[0]             # (CK, tileT)
    if use_mxu:
        # Production config (e.g. K=31, A=128): one MXU matmul per tile.
        acc = jnp.dot(w, x, preferred_element_type=jnp.float32,
                      precision=lax.Precision.HIGHEST)
    else:
        # Toy config (K=5, A=16): contraction is only 2K=10, so stay on the VPU
        # with statically unrolled broadcast-FMAs into an exact f32 accumulator.
        acc = jnp.zeros((w.shape[0], x.shape[1]), dtype=jnp.float32)
        for j in range(n_taps):
            acc = acc + w[:, j:j + 1] * x[j:j + 1, :]
    o_ref[0] = acc.astype(o_ref.dtype)


def location_layer_forward(x_ncw, w_conv_torch, w_dense_torch):
    """x_ncw: (B, 2, T); w_conv_torch: (F, 2, K); w_dense_torch: (A, F) -> (B, T, A)."""
    B, C, T = x_ncw.shape
    assert C == 2
    F, Cw, K = w_conv_torch.shape
    assert Cw == 2
    assert K % 2 == 1, "LocationLayer uses 'same' padding; kernel_size must be odd."
    A, Fd = w_dense_torch.shape
    assert Fd == F

    pad = (K - 1) // 2
    n_taps = 2 * K
    CK = _round_up(n_taps, 8)     # sublane-aligned contraction dim
    A8 = _round_up(A, 8)          # sublane-aligned attention dim

    # Time goes on the 128-lane axis.  Pick a lane tile (<=512) that divides the
    # padded time length exactly, so every store stays a full unmasked vst.
    T128 = _round_up(T, 128)
    if T128 <= 512:
        tile_t = T128
    else:
        tile_t = 512
        T128 = _round_up(T128, tile_t)
    n_t = T128 // tile_t

    # Fold the Linear into the conv taps: Wf[2k+c, a] = sum_f conv[f,c,k]*dense[a,f].
    wf = jnp.einsum("fck,af->kca",
                    w_conv_torch.astype(jnp.float32),
                    w_dense_torch.astype(jnp.float32)).reshape(n_taps, A)
    wf_t = jnp.pad(wf.T, ((0, A8 - A), (0, CK - n_taps)))          # (A8, CK)
    wf_t = wf_t.astype(x_ncw.dtype)

    # Lane-dense im2col: xcols[b, 2k+c, t] = x_zero_padded[b, c, t + k - pad].
    xpad = jnp.pad(x_ncw, ((0, 0), (0, 0), (pad, (T128 - T) + pad)))   # (B, 2, T128+K-1)
    cols = [xpad[:, c, k:k + T128] for k in range(K) for c in range(2)]
    xcols = jnp.stack(cols, axis=1)                                     # (B, 2K, T128)
    xcols = jnp.pad(xcols, ((0, 0), (0, CK - n_taps), (0, 0)))          # (B, CK, T128)

    use_mxu = A8 * n_taps >= 1024   # MXU for the real K=31/A=128 config, VPU for toy
    kernel = functools.partial(_location_kernel, n_taps=n_taps, use_mxu=use_mxu)

    out_t = pl.pallas_call(
        kernel,
        out_shape=jax.ShapeDtypeStruct((B, A8, T128), x_ncw.dtype),
        grid_spec=pltpu.PrefetchScalarGridSpec(
            num_scalar_prefetch=0,
            grid=(B, n_t),
            in_specs=[
                pl.BlockSpec((A8, CK), lambda b, t: (0, 0)),          # tiny, fetched once
                pl.BlockSpec((1, CK, tile_t), lambda b, t: (b, 0, t)),
            ],
            out_specs=pl.BlockSpec((1, A8, tile_t), lambda b, t: (b, 0, t)),
        ),
        compiler_params=pltpu.CompilerParams(
            dimension_semantics=("parallel", "parallel"),   # v7x: shard over both TCs
        ),
    )(wf_t, xcols)

    # (B, A8, T128) -> (B, T, A); padded sublanes/lanes are dropped here.
    return jnp.transpose(out_t, (0, 2, 1))[:, :T, :A]


def _xavier_uniform(key, shape, fan_in, fan_out, gain):
    bound = gain * (6.0 / (fan_in + fan_out)) ** 0.5
    return jax.random.uniform(key, shape, jnp.float32, -bound, bound)


def _reference(x_ncw, w_conv_torch, w_dense_torch):
    # Pure-JAX reference mirroring PyTorch Conv1d + transpose + Linear.
    F, _, K = w_conv_torch.shape
    pad = (K - 1) // 2
    y = lax.conv_general_dilated(
        x_ncw, w_conv_torch, window_strides=(1,), padding=[(pad, pad)],
        dimension_numbers=("NCH", "OIH", "NCH"),
    )                                                             # (B, F, T)
    y = jnp.transpose(y, (0, 2, 1))                               # (B, T, F)
    return jnp.einsum("btf,af->bta", y, w_dense_torch)            # (B, T, A)


if __name__ == "__main__":
    # LocationLayer(attention_n_filters=8, attention_kernel_size=5, attention_dim=16)
    B, T = 2, 16
    n_filters, kernel_size, attention_dim = 8, 5, 16

    key = jax.random.PRNGKey(0)
    kx, kc, kd = jax.random.split(key, 3)

    x = jax.random.normal(kx, (B, 2, T), dtype=jnp.float32)

    # Conv1d weight (F, 2, K), xavier_uniform with gain('linear') = 1.0
    w_conv = _xavier_uniform(
        kc, (n_filters, 2, kernel_size),
        fan_in=2 * kernel_size, fan_out=n_filters * kernel_size, gain=1.0,
    )
    # Linear weight (A, F), xavier_uniform with gain('tanh') = 5/3
    w_dense = _xavier_uniform(
        kd, (attention_dim, n_filters),
        fan_in=n_filters, fan_out=attention_dim, gain=5.0 / 3.0,
    )

    fwd = jax.jit(location_layer_forward)
    out = jax.block_until_ready(fwd(x, w_conv, w_dense))

    ref = _reference(x, w_conv, w_dense)
    assert out.shape == (B, T, attention_dim)
    assert jnp.allclose(out, ref, atol=2e-5, rtol=2e-5), \
        float(jnp.max(jnp.abs(out - ref)))

    print("KERNEL_OK")
</pallas_src>

<mosaic_0001>
module attributes {stable_mosaic.version = 11 : i64} {
  func.func @_location_kernel(%arg0: i32, %arg1: i32, %arg2: memref<16x16xf32, #tpu.memory_space<vmem>>, %arg3: memref<1x16x128xf32, #tpu.memory_space<vmem>>, %arg4: memref<1x16x128xf32, #tpu.memory_space<vmem>>) attributes {dimension_semantics = [#tpu.dimension_semantics<parallel>, #tpu.dimension_semantics<parallel>], iteration_bounds = array<i64: 2, 1>, scalar_prefetch = 0 : i64, scratch_operands = 0 : i64, tpu.core_type = #tpu.core_type<tc>, window_params = [{pipeline_mode = #tpu.pipeline_mode<synchronous>, transform_indices = @transform_0, window_bounds = array<i64: 16, 16>}, {transform_indices = @transform_1, window_bounds = array<i64: 1, 16, 128>}, {transform_indices = @transform_2, window_bounds = array<i64: 1, 16, 128>}]} {
    %c0 = arith.constant 0 : index
    %c0_0 = arith.constant 0 : index
    %0 = vector.load %arg2[%c0, %c0_0] : memref<16x16xf32, #tpu.memory_space<vmem>>, vector<16x16xf32>
    %c0_1 = arith.constant 0 : index
    %c0_2 = arith.constant 0 : index
    %c0_3 = arith.constant 0 : index
    %1 = vector.load %arg3[%c0_1, %c0_2, %c0_3] : memref<1x16x128xf32, #tpu.memory_space<vmem>>, vector<1x16x128xf32>
    %2 = vector.shape_cast %1 : vector<1x16x128xf32> to vector<16x128xf32>
    %cst = arith.constant 0.000000e+00 : f32
    %3 = vector.broadcast %cst : f32 to vector<16x128xf32>
    %4 = vector.extract_strided_slice %0 {offsets = [0, 0], sizes = [16, 1], strides = [1, 1]} : vector<16x16xf32> to vector<16x1xf32>
    %5 = vector.extract_strided_slice %2 {offsets = [0, 0], sizes = [1, 128], strides = [1, 1]} : vector<16x128xf32> to vector<1x128xf32>
    %6 = vector.broadcast %4 : vector<16x1xf32> to vector<16x128xf32>
    %7 = vector.broadcast %5 : vector<1x128xf32> to vector<16x128xf32>
    %8 = arith.mulf %6, %7 : vector<16x128xf32>
    %9 = arith.addf %3, %8 : vector<16x128xf32>
    %10 = vector.extract_strided_slice %0 {offsets = [0, 1], sizes = [16, 1], strides = [1, 1]} : vector<16x16xf32> to vector<16x1xf32>
    %11 = vector.extract_strided_slice %2 {offsets = [1, 0], sizes = [1, 128], strides = [1, 1]} : vector<16x128xf32> to vector<1x128xf32>
    %12 = vector.broadcast %10 : vector<16x1xf32> to vector<16x128xf32>
    %13 = vector.broadcast %11 : vector<1x128xf32> to vector<16x128xf32>
    %14 = arith.mulf %12, %13 : vector<16x128xf32>
    %15 = arith.addf %9, %14 : vector<16x128xf32>
    %16 = vector.extract_strided_slice %0 {offsets = [0, 2], sizes = [16, 1], strides = [1, 1]} : vector<16x16xf32> to vector<16x1xf32>
    %17 = vector.extract_strided_slice %2 {offsets = [2, 0], sizes = [1, 128], strides = [1, 1]} : vector<16x128xf32> to vector<1x128xf32>
    %18 = vector.broadcast %16 : vector<16x1xf32> to vector<16x128xf32>
    %19 = vector.broadcast %17 : vector<1x128xf32> to vector<16x128xf32>
    %20 = arith.mulf %18, %19 : vector<16x128xf32>
    %21 = arith.addf %15, %20 : vector<16x128xf32>
    %22 = vector.extract_strided_slice %0 {offsets = [0, 3], sizes = [16, 1], strides = [1, 1]} : vector<16x16xf32> to vector<16x1xf32>
    %23 = vector.extract_strided_slice %2 {offsets = [3, 0], sizes = [1, 128], strides = [1, 1]} : vector<16x128xf32> to vector<1x128xf32>
    %24 = vector.broadcast %22 : vector<16x1xf32> to vector<16x128xf32>
    %25 = vector.broadcast %23 : vector<1x128xf32> to vector<16x128xf32>
    %26 = arith.mulf %24, %25 : vector<16x128xf32>
    %27 = arith.addf %21, %26 : vector<16x128xf32>
    %28 = vector.extract_strided_slice %0 {offsets = [0, 4], sizes = [16, 1], strides = [1, 1]} : vector<16x16xf32> to vector<16x1xf32>
    %29 = vector.extract_strided_slice %2 {offsets = [4, 0], sizes = [1, 128], strides = [1, 1]} : vector<16x128xf32> to vector<1x128xf32>
    %30 = vector.broadcast %28 : vector<16x1xf32> to vector<16x128xf32>
    %31 = vector.broadcast %29 : vector<1x128xf32> to vector<16x128xf32>
    %32 = arith.mulf %30, %31 : vector<16x128xf32>
    %33 = arith.addf %27, %32 : vector<16x128xf32>
    %34 = vector.extract_strided_slice %0 {offsets = [0, 5], sizes = [16, 1], strides = [1, 1]} : vector<16x16xf32> to vector<16x1xf32>
    %35 = vector.extract_strided_slice %2 {offsets = [5, 0], sizes = [1, 128], strides = [1, 1]} : vector<16x128xf32> to vector<1x128xf32>
    %36 = vector.broadcast %34 : vector<16x1xf32> to vector<16x128xf32>
    %37 = vector.broadcast %35 : vector<1x128xf32> to vector<16x128xf32>
    %38 = arith.mulf %36, %37 : vector<16x128xf32>
    %39 = arith.addf %33, %38 : vector<16x128xf32>
    %40 = vector.extract_strided_slice %0 {offsets = [0, 6], sizes = [16, 1], strides = [1, 1]} : vector<16x16xf32> to vector<16x1xf32>
    %41 = vector.extract_strided_slice %2 {offsets = [6, 0], sizes = [1, 128], strides = [1, 1]} : vector<16x128xf32> to vector<1x128xf32>
    %42 = vector.broadcast %40 : vector<16x1xf32> to vector<16x128xf32>
    %43 = vector.broadcast %41 : vector<1x128xf32> to vector<16x128xf32>
    %44 = arith.mulf %42, %43 : vector<16x128xf32>
    %45 = arith.addf %39, %44 : vector<16x128xf32>
    %46 = vector.extract_strided_slice %0 {offsets = [0, 7], sizes = [16, 1], strides = [1, 1]} : vector<16x16xf32> to vector<16x1xf32>
    %47 = vector.extract_strided_slice %2 {offsets = [7, 0], sizes = [1, 128], strides = [1, 1]} : vector<16x128xf32> to vector<1x128xf32>
    %48 = vector.broadcast %46 : vector<16x1xf32> to vector<16x128xf32>
    %49 = vector.broadcast %47 : vector<1x128xf32> to vector<16x128xf32>
    %50 = arith.mulf %48, %49 : vector<16x128xf32>
    %51 = arith.addf %45, %50 : vector<16x128xf32>
    %52 = vector.extract_strided_slice %0 {offsets = [0, 8], sizes = [16, 1], strides = [1, 1]} : vector<16x16xf32> to vector<16x1xf32>
    %53 = vector.extract_strided_slice %2 {offsets = [8, 0], sizes = [1, 128], strides = [1, 1]} : vector<16x128xf32> to vector<1x128xf32>
    %54 = vector.broadcast %52 : vector<16x1xf32> to vector<16x128xf32>
    %55 = vector.broadcast %53 : vector<1x128xf32> to vector<16x128xf32>
    %56 = arith.mulf %54, %55 : vector<16x128xf32>
    %57 = arith.addf %51, %56 : vector<16x128xf32>
    %58 = vector.extract_strided_slice %0 {offsets = [0, 9], sizes = [16, 1], strides = [1, 1]} : vector<16x16xf32> to vector<16x1xf32>
    %59 = vector.extract_strided_slice %2 {offsets = [9, 0], sizes = [1, 128], strides = [1, 1]} : vector<16x128xf32> to vector<1x128xf32>
    %60 = vector.broadcast %58 : vector<16x1xf32> to vector<16x128xf32>
    %61 = vector.broadcast %59 : vector<1x128xf32> to vector<16x128xf32>
    %62 = arith.mulf %60, %61 : vector<16x128xf32>
    %63 = arith.addf %57, %62 : vector<16x128xf32>
    %c0_4 = arith.constant 0 : index
    %c0_5 = arith.constant 0 : index
    %c0_6 = arith.constant 0 : index
    %64 = vector.load %arg4[%c0_4, %c0_5, %c0_6] : memref<1x16x128xf32, #tpu.memory_space<vmem>>, vector<1x16x128xf32>
    %65 = vector.shape_cast %64 : vector<1x16x128xf32> to vector<16x128xf32>
    %66 = vector.shape_cast %63 : vector<16x128xf32> to vector<1x16x128xf32>
    tpu.vector_store %arg4[%c0_4, %c0_5, %c0_6], %66 {strides = array<i32>} : memref<1x16x128xf32, #tpu.memory_space<vmem>>, vector<1x16x128xf32>,
    return
  }
  func.func @transform_0(%arg0: i32, %arg1: i32) -> (i32, i32) {
    %c0_i32 = arith.constant 0 : i32
    %c0_i32_0 = arith.constant 0 : i32
    %c0_i32_1 = arith.constant 0 : i32
    return %c0_i32, %c0_i32_0 : i32, i32
  }
  func.func @transform_1(%arg0: i32, %arg1: i32) -> (i32, i32, i32) {
    %c0_i32 = arith.constant 0 : i32
    %c0_i32_0 = arith.constant 0 : i32
    return %arg0, %c0_i32, %arg1 : i32, i32, i32
  }
  func.func @transform_2(%arg0: i32, %arg1: i32) -> (i32, i32, i32) {
    %c0_i32 = arith.constant 0 : i32
    %c0_i32_0 = arith.constant 0 : i32
    return %arg0, %c0_i32, %arg1 : i32, i32, i32
  }
}

</mosaic_0001>

<llo_original>
// kernel: location_layer_forward.1
$region0: #{location_layer_forward.1}
  #allocation0 [shape = 'u32[]', space=smem, size = 0x4, offset = 0x4, fixed_abs, tag = 'smem constant byte address 0x4 - core index']
  #allocation1 [shape = 'u32[144,128]{1,0:T(1,128)}', space=vmem, size = 0x12000, scoped, tag = 'internal scratch']
  %s0 = inlined_call_operand.vmem [shape: f32[16,16], index: 0, kind: input, shape index: {}]
  %s1 = inlined_call_operand.vmem [shape: f32[2,16,128], index: 1, kind: input, shape index: {}]
  %s2 = inlined_call_operand.vmem [shape: f32[2,16,128], index: 2, kind: output, shape index: {}]
  %s3 = sld [smem:[#allocation0]]
  $region41: #{location_layer_forward.1} parent=0
    _
  %s5 = ssub.s32 1, %s3
  %s6 = scalar_select 0, %s5, %s3
  loop: start=0, step=1, limit=4
  $region2: #{location_layer_forward.1} parent=0 // loop_pre_header
    _
  $region3: #{location_layer_forward.1} parent=0 // loop_header
    %s8 = sphi 0, %s12
    %p9 = scmp.ge.s32.totalorder %s8, 4
    %s15 = sphi 0, %s27
    %s16 = sphi 0, %s23
    %s17 = sphi 0, %s15
    %s18 = sphi 0, %s16
    %s19 = sphi 0, %s17
    %s20 = sphi 0, %s18
    %s28 = sphi 0, %s28
    %s30 = sphi 0, %s28
    %s31 = sphi 0, %s30
    %s45 = sphi 0, %s31
    %s53 = sphi 0, %s55
    %s56 = sphi 0, %s53
    %s57 = sphi 0, %s56
    %s73 = sphi 0, %s57
    %s81 = sphi 0, %s83
    %s84 = sphi 0, %s81
    %s85 = sphi 0, %s84
    %s101 = sphi 0, %s85
  $region4: #{location_layer_forward.1} parent=0 // loop_header_branch
    %11 = sbr.rel (%p9) target = $region8
  $region5: #{location_layer_forward.1} parent=0 // loop_body
    %s13 = ssub.s32 %s8, 1
    %s14 = ssub.s32 %s8, 2
    %s21 = sadd.s32 1, %s16
    %p22 = scmp.ge.s32.totalorder %s21, 1
    %s23 = scalar_select %p22, 0, %s21
    %s24 = sadd.s32 1, %s15
    %s25 = scalar_select %p22, %s24, %s15
    %p26 = scmp.ge.s32.totalorder %s25, 2
    %s27 = scalar_select %p26, 0, %s25
    %s29 = sadd.s32 %s28, 1
    %p32 = scmp.eq.s32.totalorder %s8, 1
    %p33 = scmp.ne.s32.totalorder %s28, %s30
    %p34 = scmp.eq.s32.totalorder %s8, 0
    %p35 = por %p33, %p34
    %p36 = scmp.ne.s32.totalorder %s28, %s30
    %p37 = scmp.eq.s32.totalorder %s13, 1
    %p38 = por %p36, %p37
    %p39 = scmp.ne.s32.totalorder %s30, %s31
    %p40 = scmp.eq.s32.totalorder %s13, 0
    %p41 = por %p39, %p40
    %p42 = scmp.ne.s32.totalorder %s30, %s31
    %p43 = scmp.eq.s32.totalorder %s14, 1
    %p44 = por %p42, %p43
    %p46 = scmp.ne.s32.totalorder %s31, %s45
    %p47 = scmp.eq.s32.totalorder %s14, 0
    %p48 = por %p46, %p47
    %s49 = ssub.s32 %s15, %s27
    %s50 = ssub.s32 %s16, %s23
    %s51 = sor.u32 %s49, %s50
    %p52 = scmp.eq.s32.totalorder %s51, 0
    %s54 = sadd.s32 %s53, 1
    %s55 = scalar_select %p52, %s53, %s54
    %p58 = pneg %p52
    %p59 = scmp.eq.s32.totalorder %s8, 1
    %p60 = por %p58, %p59
    %p61 = scmp.ne.s32.totalorder %s53, %s56
    %p62 = scmp.eq.s32.totalorder %s8, 0
    %p63 = por %p61, %p62
    %p64 = scmp.ne.s32.totalorder %s53, %s56
    %p65 = scmp.eq.s32.totalorder %s13, 1
    %p66 = por %p64, %p65
    %p67 = scmp.ne.s32.totalorder %s56, %s57
    %p68 = scmp.eq.s32.totalorder %s13, 0
    %p69 = por %p67, %p68
    %p70 = scmp.ne.s32.totalorder %s56, %s57
    %p71 = scmp.eq.s32.totalorder %s14, 1
    %p72 = por %p70, %p71
    %p74 = scmp.ne.s32.totalorder %s57, %s73
    %p75 = scmp.eq.s32.totalorder %s14, 0
    %p76 = por %p74, %p75
    %s77 = ssub.s32 %s15, %s27
    %s78 = ssub.s32 %s16, %s23
    %s79 = sor.u32 %s77, %s78
    %p80 = scmp.eq.s32.totalorder %s79, 0
    %s82 = sadd.s32 %s81, 1
    %s83 = scalar_select %p80, %s81, %s82
    %p86 = pneg %p80
    %p87 = scmp.eq.s32.totalorder %s8, 1
    %p88 = por %p86, %p87
    %p89 = scmp.ne.s32.totalorder %s81, %s84
    %p90 = scmp.eq.s32.totalorder %s8, 0
    %p91 = por %p89, %p90
    %p92 = scmp.ne.s32.totalorder %s81, %s84
    %p93 = scmp.eq.s32.totalorder %s13, 1
    %p94 = por %p92, %p93
    %p95 = scmp.ne.s32.totalorder %s84, %s85
    %p96 = scmp.eq.s32.totalorder %s13, 0
    %p97 = por %p95, %p96
    %p98 = scmp.ne.s32.totalorder %s84, %s85
    %p99 = scmp.eq.s32.totalorder %s14, 1
    %p100 = por %p98, %p99
    %p102 = scmp.ne.s32.totalorder %s85, %s101
    %p103 = scmp.eq.s32.totalorder %s14, 0
    %p104 = por %p102, %p103
    %p105 = scmp.le.s32.totalorder 1, %s8
    %p106 = scmp.lt.s32.totalorder %s8, 3
    %p107 = pnand %p105, %p106
    %p108 = pneg %p107
    // Predicated region
    $region9: #{location_layer_forward.1} parent=5 // pred_check
      _
    $region10: #{location_layer_forward.1} parent=5 // pred_check_branch
      %110 = sbr.rel (%p107) target = $region12
    $region11: #{location_layer_forward.1} parent=5 // pred_region
      %s111 = ssub.s32 %s8, 1
      // Predicated region
      $region13: #{location_layer_forward.1} parent=11 // pred_check
        %p112 = pneg %p41
      $region14: #{location_layer_forward.1} parent=11 // pred_check_branch
        %114 = sbr.rel (%p112) target = $region16
      $region15: #{location_layer_forward.1} parent=11 // pred_region
        _
      $region16: #{location_layer_forward.1} parent=11 // pred_fallthru
        _
    $region12: #{location_layer_forward.1} parent=5 // pred_fallthru
      _
    %p115 = scmp.lt.s32.totalorder %s8, 2
    // Predicated region
    $region17: #{location_layer_forward.1} parent=5 // pred_check
      %p116 = pneg %p115
    $region18: #{location_layer_forward.1} parent=5 // pred_check_branch
      %118 = sbr.rel (%p116) target = $region20
    $region19: #{location_layer_forward.1} parent=5 // pred_region
      // Predicated region
      $region21: #{location_layer_forward.1} parent=19 // pred_check
        %p119 = pneg %p63
      $region22: #{location_layer_forward.1} parent=19 // pred_check_branch
        %121 = sbr.rel (%p119) target = $region24
      $region23: #{location_layer_forward.1} parent=19 // pred_region
        %p122 = scmp.lt.s32.totalorder %s15, 1
        %s123 = scalar_select %p122, %s15, 1
        %p124 = scmp.lt.s32.totalorder %s16, 0
        %s125 = scalar_select %p124, %s16, 0
        %s126 = smul.addr %s123, 2
        %s127 = sadd.s32 %s125, %s126
        %s128 = smul.addr %s127, 8
        %s129 = scalar_lea.vmem %s1, %s128
      $region24: #{location_layer_forward.1} parent=19 // pred_fallthru
        _
    $region20: #{location_layer_forward.1} parent=5 // pred_fallthru
      _
    %p130 = scmp.le.s32.totalorder 1, %s8
    %p131 = scmp.lt.s32.totalorder %s8, 3
    %p132 = pnand %p130, %p131
    %p133 = pneg %p132
    // Predicated region
    $region25: #{location_layer_forward.1} parent=5 // pred_check
      _
    $region26: #{location_layer_forward.1} parent=5 // pred_check_branch
      %135 = sbr.rel (%p132) target = $region28
    $region27: #{location_layer_forward.1} parent=5 // pred_region
      %s136 = ssub.s32 %s8, 1
      %p137 = pneg %p41
      %p138 = pneg %p38
      %p139 = scmp.lt.s32.totalorder %s17, 1
      %s140 = scalar_select %p139, %s17, 1
      %p141 = scmp.lt.s32.totalorder %s18, 0
      %s142 = scalar_select %p141, %s18, 0
      %s143 = smul.addr %s140, 2
      %s144 = sadd.s32 %s142, %s143
      %s145 = smul.addr %s144, 8
      %s146 = scalar_lea.vmem %s1, %s145
      %p147 = pneg %p69
      %p148 = pneg %p66
      %p149 = pneg %p97
      %p150 = pneg %p94
      %p151 = scmp.lt.s32.totalorder %s17, 1
      %s152 = scalar_select %p151, %s17, 1
      %p153 = scmp.lt.s32.totalorder %s18, 0
      %s154 = scalar_select %p153, %s18, 0
      %s155 = smul.addr %s152, 2
      %s156 = sadd.s32 %s154, %s155
      %s157 = smul.addr %s156, 8
      %s158 = scalar_lea.vmem %s2, %s157
      %p159 = scmp.lt.s32.totalorder %s17, 1
      %s160 = scalar_select %p159, %s17, 1
      %p161 = scmp.lt.s32.totalorder %s18, 0
      %s162 = scalar_select %p161, %s18, 0
      %s163 = smul.addr %s160, 2
      %s164 = sadd.s32 %s162, %s163
      %s165 = smul.addr %s164, 8
      %s166 = scalar_lea.vmem %s1, %s165
      %p167 = scmp.lt.s32.totalorder %s17, 1
      %s168 = scalar_select %p167, %s17, 1
      %p169 = scmp.lt.s32.totalorder %s18, 0
      %s170 = scalar_select %p169, %s18, 0
      %s171 = smul.addr %s168, 2
      %s172 = sadd.s32 %s170, %s171
      %s173 = smul.addr %s172, 8
      %s174 = scalar_lea.vmem %s2, %s173
      %v175 = vld [vmem:[%s0] sm:$0xff]
      %v176 = vld [vmem:[%s0 + $0x8] sm:$0xff]
      %v177 = vld [vmem:[%s166] sm:$0xff]
      %v178 = vld [vmem:[%s166 + $0x8] sm:$0xff]
      %180 = vset.pattern.permute.xlu0 0
      %181 = vperm.xlu0 %180, %v175
      %v182 = vpop.permute.xlu0 %181
      %185 = vset.pattern.permute.xlu0 0
      %186 = vperm.xlu0 %185, %v176
      %v187 = vpop.permute.xlu0 %186
      %v189 = vlaneseq
      %v190 = vshrl.u32 %v189, 7
      %v191 = vsub.s32 0, %v190
      %v192 = vrot.slane %v177, %v191
      %v193 = vmul.f32 %v182, %v192
      %v194 = vmul.f32 %v187, %v192
      %v195 = vadd.f32 %v193, 0.0
      %v196 = vadd.f32 %v194, 0.0
      %197 = vset.pattern.permute.xlu0 1
      %198 = vperm.xlu0 %197, %v175
      %v199 = vpop.permute.xlu0 %198
      %201 = vset.pattern.permute.xlu0 1
      %202 = vperm.xlu0 %201, %v176
      %v203 = vpop.permute.xlu0 %202
      %v205 = vlaneseq
      %v206 = vshrl.u32 %v205, 7
      %v207 = vsub.s32 1, %v206
      %v208 = vrot.slane %v177, %v207
      %v209 = vmul.f32 %v199, %v208
      %v210 = vmul.f32 %v203, %v208
      %v211 = vadd.f32 %v195, %v209
      %v212 = vadd.f32 %v196, %v210
      %213 = vset.pattern.permute.xlu0 2
      %214 = vperm.xlu0 %213, %v175
      %v215 = vpop.permute.xlu0 %214
      %217 = vset.pattern.permute.xlu0 2
      %218 = vperm.xlu0 %217, %v176
      %v219 = vpop.permute.xlu0 %218
      %v221 = vlaneseq
      %v222 = vshrl.u32 %v221, 7
      %v223 = vsub.s32 2, %v222
      %v224 = vrot.slane %v177, %v223
      %v225 = vmul.f32 %v215, %v224
      %v226 = vmul.f32 %v219, %v224
      %v227 = vadd.f32 %v211, %v225
      %v228 = vadd.f32 %v212, %v226
      %229 = vset.pattern.permute.xlu0 3
      %230 = vperm.xlu0 %229, %v175
      %v231 = vpop.permute.xlu0 %230
      %233 = vset.pattern.permute.xlu0 3
      %234 = vperm.xlu0 %233, %v176
      %v235 = vpop.permute.xlu0 %234
      %v237 = vlaneseq
      %v238 = vshrl.u32 %v237, 7
      %v239 = vsub.s32 3, %v238
      %v240 = vrot.slane %v177, %v239
      %v241 = vmul.f32 %v231, %v240
      %v242 = vmul.f32 %v235, %v240
      %v243 = vadd.f32 %v227, %v241
      %v244 = vadd.f32 %v228, %v242
      %245 = vset.pattern.permute.xlu0 4
      %246 = vperm.xlu0 %245, %v175
      %v247 = vpop.permute.xlu0 %246
      %249 = vset.pattern.permute.xlu0 4
      %250 = vperm.xlu0 %249, %v176
      %v251 = vpop.permute.xlu0 %250
      %v253 = vlaneseq
      %v254 = vshrl.u32 %v253, 7
      %v255 = vsub.s32 4, %v254
      %v256 = vrot.slane %v177, %v255
      %v257 = vmul.f32 %v247, %v256
      %v258 = vmul.f32 %v251, %v256
      %v259 = vadd.f32 %v243, %v257
      %v260 = vadd.f32 %v244, %v258
      %261 = vset.pattern.permute.xlu0 5
      %262 = vperm.xlu0 %261, %v175
      %v263 = vpop.permute.xlu0 %262
      %265 = vset.pattern.permute.xlu0 5
      %266 = vperm.xlu0 %265, %v176
      %v267 = vpop.permute.xlu0 %266
      %v269 = vlaneseq
      %v270 = vshrl.u32 %v269, 7
      %v271 = vsub.s32 5, %v270
      %v272 = vrot.slane %v177, %v271
      %v273 = vmul.f32 %v263, %v272
      %v274 = vmul.f32 %v267, %v272
      %v275 = vadd.f32 %v259, %v273
      %v276 = vadd.f32 %v260, %v274
      %277 = vset.pattern.permute.xlu0 6
      %278 = vperm.xlu0 %277, %v175
      %v279 = vpop.permute.xlu0 %278
      %281 = vset.pattern.permute.xlu0 6
      %282 = vperm.xlu0 %281, %v176
      %v283 = vpop.permute.xlu0 %282
      %v285 = vlaneseq
      %v286 = vshrl.u32 %v285, 7
      %v287 = vsub.s32 6, %v286
      %v288 = vrot.slane %v177, %v287
      %v289 = vmul.f32 %v279, %v288
      %v290 = vmul.f32 %v283, %v288
      %v291 = vadd.f32 %v275, %v289
      %v292 = vadd.f32 %v276, %v290
      %293 = vset.pattern.permute.xlu0 7
      %294 = vperm.xlu0 %293, %v175
      %v295 = vpop.permute.xlu0 %294
      %297 = vset.pattern.permute.xlu0 7
      %298 = vperm.xlu0 %297, %v176
      %v299 = vpop.permute.xlu0 %298
      %v301 = vlaneseq
      %v302 = vshrl.u32 %v301, 7
      %v303 = vsub.s32 7, %v302
      %v304 = vrot.slane %v177, %v303
      %v305 = vmul.f32 %v295, %v304
      %v306 = vmul.f32 %v299, %v304
      %v307 = vadd.f32 %v291, %v305
      %v308 = vadd.f32 %v292, %v306
      %309 = vset.pattern.permute.xlu0 8
      %310 = vperm.xlu0 %309, %v175
      %v311 = vpop.permute.xlu0 %310
      %313 = vset.pattern.permute.xlu0 8
      %314 = vperm.xlu0 %313, %v176
      %v315 = vpop.permute.xlu0 %314
      %v317 = vlaneseq
      %v318 = vshrl.u32 %v317, 7
      %v319 = vsub.s32 0, %v318
      %v320 = vrot.slane %v178, %v319
      %v321 = vmul.f32 %v311, %v320
      %v322 = vmul.f32 %v315, %v320
      %v323 = vadd.f32 %v307, %v321
      %v324 = vadd.f32 %v308, %v322
      %325 = vset.pattern.permute.xlu0 9
      %326 = vperm.xlu0 %325, %v175
      %v327 = vpop.permute.xlu0 %326
      %329 = vset.pattern.permute.xlu0 9
      %330 = vperm.xlu0 %329, %v176
      %v331 = vpop.permute.xlu0 %330
      %v333 = vlaneseq
      %v334 = vshrl.u32 %v333, 7
      %v335 = vsub.s32 1, %v334
      %v336 = vrot.slane %v178, %v335
      %v337 = vmul.f32 %v327, %v336
      %v338 = vmul.f32 %v331, %v336
      %v339 = vadd.f32 %v323, %v337
      %v340 = vadd.f32 %v324, %v338
      %341 = vst [vmem:[%s174] sm:$0xff] %v339
      %342 = vst [vmem:[%s174 + $0x8] sm:$0xff] %v340
      %p343 = scmp.lt.s32.totalorder %s17, 1
      %s344 = scalar_select %p343, %s17, 1
      %p345 = scmp.lt.s32.totalorder %s18, 0
      %s346 = scalar_select %p345, %s18, 0
      %s347 = smul.addr %s344, 2
      %s348 = sadd.s32 %s346, %s347
      %s349 = smul.addr %s348, 8
      %s350 = scalar_lea.vmem %s2, %s349
      // Predicated region
      $region29: #{location_layer_forward.1} parent=27 // pred_check
        %p351 = pneg %p94
      $region30: #{location_layer_forward.1} parent=27 // pred_check_branch
        %353 = sbr.rel (%p351) target = $region32
      $region31: #{location_layer_forward.1} parent=27 // pred_region
        _
      $region32: #{location_layer_forward.1} parent=27 // pred_fallthru
        _
    $region28: #{location_layer_forward.1} parent=5 // pred_fallthru
      _
    %p354 = scmp.le.s32.totalorder 2, %s8
    // Predicated region
    $region33: #{location_layer_forward.1} parent=5 // pred_check
      %p355 = pneg %p354
    $region34: #{location_layer_forward.1} parent=5 // pred_check_branch
      %357 = sbr.rel (%p355) target = $region36
    $region35: #{location_layer_forward.1} parent=5 // pred_region
      %s358 = ssub.s32 %s8, 2
      // Predicated region
      $region37: #{location_layer_forward.1} parent=35 // pred_check
        %p359 = pneg %p100
      $region38: #{location_layer_forward.1} parent=35 // pred_check_branch
        %361 = sbr.rel (%p359) target = $region40
      $region39: #{location_layer_forward.1} parent=35 // pred_region
        %p362 = scmp.lt.s32.totalorder %s19, 1
        %s363 = scalar_select %p362, %s19, 1
        %p364 = scmp.lt.s32.totalorder %s20, 0
        %s365 = scalar_select %p364, %s20, 0
        %s366 = smul.addr %s363, 2
        %s367 = sadd.s32 %s365, %s366
        %s368 = smul.addr %s367, 8
        %s369 = scalar_lea.vmem %s2, %s368
      $region40: #{location_layer_forward.1} parent=35 // pred_fallthru
        _
    $region36: #{location_layer_forward.1} parent=5 // pred_fallthru
      _
  $region6: #{location_layer_forward.1} parent=0 // loop_footer
    %s12 = sadd.s32 1, %s8
  $region7: #{location_layer_forward.1} parent=0 // loop_footer_branch
    %7 = sbr.rel target = $region3
  $region8: #{location_layer_forward.1} parent=0 // loop_exit
    _

</llo_original>
